<compile_context>
chip_gen: v7x
topology: tpu7x:2x2x1
jax: 0.10.0
libtpu: 0.0.40
codegen_flags: <defaults>
</compile_context>

<pallas_src>
import math
import jax
import jax.numpy as jnp
from jax.experimental import pallas as pl
from jax.experimental.pallas import tpu as pltpu


def make_encoder_kernel(seq_len):
    S = seq_len

    def encoder_kernel(x_ref, wk_ref, bk_ref, wq_ref, bq_ref, wv_ref, bv_ref,
                       b1_ref, w2_ref, b2_ref, o_ref):
        rows, _ = x_ref.shape
        TB = rows // S                               # batches in this block

        x2d = x_ref[...]                             # (rows, F)

        # ---- projections over all rows at once (no lane slicing) ---------
        K = jnp.dot(x2d, wk_ref[...],
                    preferred_element_type=jnp.float32) + bk_ref[...]     # (rows, H)
        Q = jnp.dot(x2d, wq_ref[...],
                    preferred_element_type=jnp.float32) + bq_ref[...]     # (rows, H), pre-scaled
        Vp = jnp.dot(x2d, wv_ref[...],
                     preferred_element_type=jnp.float32) + bv_ref[...]    # (rows, 64), w1 folded in

        # ---- per-batch attention; S == 8 rows -> sublane-aligned slices --
        att_rows = []
        for b in range(TB):                          # static, tiny unroll
            qs = Q[b * S:(b + 1) * S, :]
            ks = K[b * S:(b + 1) * S, :]
            vs = Vp[b * S:(b + 1) * S, :]
            scores = jnp.einsum('qh,kh->qk', qs, ks,
                                preferred_element_type=jnp.float32)       # (S, S)
            # softmax over last axis (Encoder.forward passes target_mask=None)
            scores = scores - jnp.max(scores, axis=-1, keepdims=True)
            e = jnp.exp(scores)
            p = e * pl.reciprocal(jnp.sum(e, axis=-1, keepdims=True),
                                  approx=True)
            att_rows.append(jnp.dot(p, vs,
                                    preferred_element_type=jnp.float32))  # (S, 64)
        att = att_rows[0] if TB == 1 else jnp.concatenate(att_rows, axis=0)

        # ---- remaining FFN: +b1, ReLU, Linear(64 -> F) --------------------
        h = jnp.maximum(att + b1_ref[...], 0.0)                           # (rows, 64)
        out = jnp.dot(h, w2_ref[...],
                      preferred_element_type=jnp.float32) + b2_ref[...]   # (rows, F)

        # single lane-dense store of the whole row block
        o_ref[...] = out.astype(o_ref.dtype)

    return encoder_kernel


def encoder_forward(x, params, *, num_batch_blocks=None):
    """Forward pass of the PyTorch Encoder. x: (B, S, F) float32."""
    B, S, F = x.shape
    H = params["wk"].shape[0]
    scale = jnp.float32(1.0 / math.sqrt(H))

    # ---- one-time wrapper-side packing -----------------------------------
    wk = params["wk"].T.astype(jnp.float32)                               # (F, H)
    bk = params["bk"].astype(jnp.float32)                                 # (1, H)
    wq = (params["wq"].T * scale).astype(jnp.float32)                     # (F, H), 1/sqrt(H) folded
    bq = (params["bq"] * scale).astype(jnp.float32)                       # (1, H)
    w1t = params["w1"].T.astype(jnp.float32)                              # (H, 64)
    # Fold FFN layer 1 into the V projection: (p@V)@w1^T == p@(V@w1^T).
    wv_fold = (params["wv"].T.astype(jnp.float32) @ w1t)                  # (F, 64)
    bv_fold = (params["bv"].astype(jnp.float32) @ w1t)                    # (1, 64)
    b1 = params["b1"].astype(jnp.float32)                                 # (1, 64) -- added in-kernel, NOT folded
    w2t = params["w2"].T.astype(jnp.float32)                              # (64, F)
    b2 = params["b2"].astype(jnp.float32)                                 # (1, F)

    ffn_hidden = w1t.shape[1]

    # ---- batch blocking: 2 blocks -> one per TensorCore on v7x ------------
    if num_batch_blocks is None:
        num_batch_blocks = 2 if B >= 2 else 1
    nb = max(1, min(num_batch_blocks, B))
    if B % nb != 0:
        nb = 1
    tb = B // nb
    if nb > 1 and (tb * S) % 8 != 0:      # keep row blocks sublane-aligned
        nb, tb = 1, B

    # ---- 3D<->2D reshapes live in the wrapper (free XLA layout change) ---
    x2d = x.reshape(B * S, F).astype(jnp.float32)
    rows_blk = tb * S

    def rep_spec(arr):
        nd = arr.ndim
        return pl.BlockSpec(arr.shape, lambda i, _nd=nd: (0,) * _nd)

    # ---- VMEM budget: size the block against the 64 MiB v7x VMEM ---------
    weight_bytes = 4 * (wk.size + bk.size + wq.size + bq.size + wv_fold.size
                        + bv_fold.size + b1.size + w2t.size + b2.size)
    block_io_bytes = 4 * rows_blk * F * 2                 # x block + out block
    interm_bytes = 4 * (rows_blk * (2 * H + 2 * ffn_hidden) + tb * S * S * 3)
    vmem_needed = 2 * (block_io_bytes + weight_bytes) + interm_bytes
    vmem_limit = int(min(max(2 * vmem_needed, 32 * 1024 * 1024),
                         64 * 1024 * 1024))

    flops = 2 * B * S * (2 * F * H + F * ffn_hidden            # K/Q/V' proj
                         + S * H + S * ffn_hidden              # QK^T, p@V'
                         + ffn_hidden * F)                      # final linear
    transcendentals = B * S * S + B * S                         # exp + recip
    bytes_accessed = 4 * (x2d.size + B * S * F) + weight_bytes

    kernel = make_encoder_kernel(S)

    out2d = pl.pallas_call(
        kernel,
        out_shape=jax.ShapeDtypeStruct((B * S, F), jnp.float32),
        grid=(nb,),
        in_specs=[
            pl.BlockSpec((rows_blk, F), lambda i: (i, 0)),      # x rows, blocked
            rep_spec(wk), rep_spec(bk),
            rep_spec(wq), rep_spec(bq),
            rep_spec(wv_fold), rep_spec(bv_fold),
            rep_spec(b1), rep_spec(w2t), rep_spec(b2),
        ],
        out_specs=pl.BlockSpec((rows_blk, F), lambda i: (i, 0)),
        compiler_params=pltpu.CompilerParams(
            dimension_semantics=("parallel",),
            vmem_limit_bytes=vmem_limit),
        cost_estimate=pl.CostEstimate(flops=flops,
                                      transcendentals=transcendentals,
                                      bytes_accessed=bytes_accessed),
    )(x2d, wk, bk, wq, bq, wv_fold, bv_fold, b1, w2t, b2)

    return out2d.reshape(B, S, F)


def make_params(key, n_features, hidden_dim, ffn_hidden=64):
    # Deterministic synthetic init (PyTorch Linear shapes: W is (out, in)).
    ks = jax.random.split(key, 10)

    def u(k, shape, fan_in):
        bound = 1.0 / math.sqrt(fan_in)
        return jax.random.uniform(k, shape, jnp.float32, -bound, bound)

    return {
        "wk": u(ks[0], (hidden_dim, n_features), n_features),
        "bk": u(ks[1], (1, hidden_dim), n_features),
        "wq": u(ks[2], (hidden_dim, n_features), n_features),
        "bq": u(ks[3], (1, hidden_dim), n_features),
        "wv": u(ks[4], (hidden_dim, n_features), n_features),
        "bv": u(ks[5], (1, hidden_dim), n_features),
        "w1": u(ks[6], (ffn_hidden, hidden_dim), hidden_dim),     # Linear(2, 64)
        "b1": u(ks[7], (1, ffn_hidden), hidden_dim),
        "w2": u(ks[8], (n_features, ffn_hidden), ffn_hidden),     # Linear(64, F)
        "b2": u(ks[9], (1, n_features), ffn_hidden),
    }


def encoder_reference(x, p):
    # Pure-JAX reference of the PyTorch forward, for a correctness check.
    K = x @ p["wk"].T + p["bk"]
    Q = x @ p["wq"].T + p["bq"]
    V = x @ p["wv"].T + p["bv"]
    H = p["wk"].shape[0]
    s = (Q @ jnp.swapaxes(K, -2, -1)) / jnp.sqrt(jnp.float32(H))
    a = jax.nn.softmax(s, axis=-1)
    att = a @ V
    h = jnp.maximum(att @ p["w1"].T + p["b1"], 0.0)
    return h @ p["w2"].T + p["b2"]


if __name__ == "__main__":
    B, S, F, H = 2, 8, 4, 2   # hidden_dim must be 2 (ffn is Linear(2, 64))
    key = jax.random.PRNGKey(0)
    kx, kp = jax.random.split(key)
    x = jax.random.normal(kx, (B, S, F), dtype=jnp.float32)
    params = make_params(kp, n_features=F, hidden_dim=H)

    out = encoder_forward(x, params)
    out = jax.block_until_ready(out)

    ref = encoder_reference(x, params)
    assert out.shape == (B, S, F)
    # tolerance covers the EUP approximate-reciprocal softmax denominator
    assert jnp.allclose(out, ref, atol=2e-3, rtol=2e-3), "mismatch vs reference"
    print("KERNEL_OK")
</pallas_src>

<mosaic_0001>
module attributes {stable_mosaic.version = 11 : i64} {
  func.func @encoder_kernel(%arg0: i32, %arg1: memref<8x4xf32, #tpu.memory_space<vmem>>, %arg2: memref<4x2xf32, #tpu.memory_space<vmem>>, %arg3: memref<1x2xf32, #tpu.memory_space<vmem>>, %arg4: memref<4x2xf32, #tpu.memory_space<vmem>>, %arg5: memref<1x2xf32, #tpu.memory_space<vmem>>, %arg6: memref<4x64xf32, #tpu.memory_space<vmem>>, %arg7: memref<1x64xf32, #tpu.memory_space<vmem>>, %arg8: memref<1x64xf32, #tpu.memory_space<vmem>>, %arg9: memref<64x4xf32, #tpu.memory_space<vmem>>, %arg10: memref<1x4xf32, #tpu.memory_space<vmem>>, %arg11: memref<8x4xf32, #tpu.memory_space<vmem>>) attributes {dimension_semantics = [#tpu.dimension_semantics<parallel>], iteration_bounds = array<i64: 2>, scalar_prefetch = 0 : i64, scratch_operands = 0 : i64, tpu.core_type = #tpu.core_type<tc>, window_params = [{transform_indices = @transform_0, window_bounds = array<i64: 8, 4>}, {pipeline_mode = #tpu.pipeline_mode<synchronous>, transform_indices = @transform_1, window_bounds = array<i64: 4, 2>}, {pipeline_mode = #tpu.pipeline_mode<synchronous>, transform_indices = @transform_2, window_bounds = array<i64: 1, 2>}, {pipeline_mode = #tpu.pipeline_mode<synchronous>, transform_indices = @transform_3, window_bounds = array<i64: 4, 2>}, {pipeline_mode = #tpu.pipeline_mode<synchronous>, transform_indices = @transform_4, window_bounds = array<i64: 1, 2>}, {pipeline_mode = #tpu.pipeline_mode<synchronous>, transform_indices = @transform_5, window_bounds = array<i64: 4, 64>}, {pipeline_mode = #tpu.pipeline_mode<synchronous>, transform_indices = @transform_6, window_bounds = array<i64: 1, 64>}, {pipeline_mode = #tpu.pipeline_mode<synchronous>, transform_indices = @transform_7, window_bounds = array<i64: 1, 64>}, {pipeline_mode = #tpu.pipeline_mode<synchronous>, transform_indices = @transform_8, window_bounds = array<i64: 64, 4>}, {pipeline_mode = #tpu.pipeline_mode<synchronous>, transform_indices = @transform_9, window_bounds = array<i64: 1, 4>}, {transform_indices = @transform_10, window_bounds = array<i64: 8, 4>}]} {
    %c0 = arith.constant 0 : index
    %c0_0 = arith.constant 0 : index
    %0 = vector.load %arg1[%c0, %c0_0] : memref<8x4xf32, #tpu.memory_space<vmem>>, vector<8x4xf32>
    %c0_1 = arith.constant 0 : index
    %c0_2 = arith.constant 0 : index
    %1 = vector.load %arg2[%c0_1, %c0_2] : memref<4x2xf32, #tpu.memory_space<vmem>>, vector<4x2xf32>
    %cst = arith.constant dense<0.000000e+00> : vector<8x2xf32>
    %2 = tpu.matmul %0, %1, %cst {dimension_numbers = #tpu.dot_dimension_numbers<[1], [0], [0], [1], [0, 0, 1, 1], [], []>} : vector<8x4xf32>, vector<4x2xf32>, vector<8x2xf32> -> vector<8x2xf32>
    %c0_3 = arith.constant 0 : index
    %c0_4 = arith.constant 0 : index
    %3 = vector.load %arg3[%c0_3, %c0_4] : memref<1x2xf32, #tpu.memory_space<vmem>>, vector<1x2xf32>
    %4 = vector.broadcast %3 : vector<1x2xf32> to vector<8x2xf32>
    %5 = arith.addf %2, %4 : vector<8x2xf32>
    %c0_5 = arith.constant 0 : index
    %c0_6 = arith.constant 0 : index
    %6 = vector.load %arg4[%c0_5, %c0_6] : memref<4x2xf32, #tpu.memory_space<vmem>>, vector<4x2xf32>
    %cst_7 = arith.constant dense<0.000000e+00> : vector<8x2xf32>
    %7 = tpu.matmul %0, %6, %cst_7 {dimension_numbers = #tpu.dot_dimension_numbers<[1], [0], [0], [1], [0, 0, 1, 1], [], []>} : vector<8x4xf32>, vector<4x2xf32>, vector<8x2xf32> -> vector<8x2xf32>
    %c0_8 = arith.constant 0 : index
    %c0_9 = arith.constant 0 : index
    %8 = vector.load %arg5[%c0_8, %c0_9] : memref<1x2xf32, #tpu.memory_space<vmem>>, vector<1x2xf32>
    %9 = vector.broadcast %8 : vector<1x2xf32> to vector<8x2xf32>
    %10 = arith.addf %7, %9 : vector<8x2xf32>
    %c0_10 = arith.constant 0 : index
    %c0_11 = arith.constant 0 : index
    %11 = vector.load %arg6[%c0_10, %c0_11] : memref<4x64xf32, #tpu.memory_space<vmem>>, vector<4x64xf32>
    %cst_12 = arith.constant dense<0.000000e+00> : vector<8x64xf32>
    %12 = tpu.matmul %0, %11, %cst_12 {dimension_numbers = #tpu.dot_dimension_numbers<[1], [0], [0], [1], [0, 0, 1, 1], [], []>} : vector<8x4xf32>, vector<4x64xf32>, vector<8x64xf32> -> vector<8x64xf32>
    %c0_13 = arith.constant 0 : index
    %c0_14 = arith.constant 0 : index
    %13 = vector.load %arg7[%c0_13, %c0_14] : memref<1x64xf32, #tpu.memory_space<vmem>>, vector<1x64xf32>
    %14 = vector.broadcast %13 : vector<1x64xf32> to vector<8x64xf32>
    %15 = arith.addf %12, %14 : vector<8x64xf32>
    "tpu.trace_start"() <{level = 10 : i32, message = "qh,kh->qk"}> : () -> ()
    %cst_15 = arith.constant dense<0.000000e+00> : vector<8x8xf32>
    %16 = tpu.matmul %10, %5, %cst_15 {dimension_numbers = #tpu.dot_dimension_numbers<[1], [1], [0], [0], [0, 0, 1, 0], [], []>} : vector<8x2xf32>, vector<8x2xf32>, vector<8x8xf32> -> vector<8x8xf32>
    "tpu.trace_stop"() : () -> ()
    %cst_16 = arith.constant dense<0xFF800000> : vector<8xf32>
    %17 = vector.multi_reduction <maximumf>, %16, %cst_16 [1] : vector<8x8xf32> to vector<8xf32>
    %18 = vector.shape_cast %17 : vector<8xf32> to vector<8x1xf32>
    %19 = vector.broadcast %18 : vector<8x1xf32> to vector<8x8xf32>
    %20 = arith.subf %16, %19 : vector<8x8xf32>
    %21 = math.exp %20 : vector<8x8xf32>
    %cst_17 = arith.constant dense<0.000000e+00> : vector<8xf32>
    %22 = vector.multi_reduction <add>, %21, %cst_17 [1] : vector<8x8xf32> to vector<8xf32>
    %23 = vector.shape_cast %22 : vector<8xf32> to vector<8x1xf32>
    %24 = tpu.reciprocal %23 {approx = true} : vector<8x1xf32> -> vector<8x1xf32>
    %25 = vector.broadcast %24 : vector<8x1xf32> to vector<8x8xf32>
    %26 = arith.mulf %21, %25 : vector<8x8xf32>
    %cst_18 = arith.constant dense<0.000000e+00> : vector<8x64xf32>
    %27 = tpu.matmul %26, %15, %cst_18 {dimension_numbers = #tpu.dot_dimension_numbers<[1], [0], [0], [1], [0, 0, 1, 1], [], []>} : vector<8x8xf32>, vector<8x64xf32>, vector<8x64xf32> -> vector<8x64xf32>
    %c0_19 = arith.constant 0 : index
    %c0_20 = arith.constant 0 : index
    %28 = vector.load %arg8[%c0_19, %c0_20] : memref<1x64xf32, #tpu.memory_space<vmem>>, vector<1x64xf32>
    %29 = vector.broadcast %28 : vector<1x64xf32> to vector<8x64xf32>
    %30 = arith.addf %27, %29 : vector<8x64xf32>
    %cst_21 = arith.constant 0.000000e+00 : f32
    %31 = vector.broadcast %cst_21 : f32 to vector<8x64xf32>
    %32 = arith.maximumf %30, %31 : vector<8x64xf32>
    %c0_22 = arith.constant 0 : index
    %c0_23 = arith.constant 0 : index
    %33 = vector.load %arg9[%c0_22, %c0_23] : memref<64x4xf32, #tpu.memory_space<vmem>>, vector<64x4xf32>
    %cst_24 = arith.constant dense<0.000000e+00> : vector<8x4xf32>
    %34 = tpu.matmul %32, %33, %cst_24 {dimension_numbers = #tpu.dot_dimension_numbers<[1], [0], [0], [1], [0, 0, 1, 1], [], []>} : vector<8x64xf32>, vector<64x4xf32>, vector<8x4xf32> -> vector<8x4xf32>
    %c0_25 = arith.constant 0 : index
    %c0_26 = arith.constant 0 : index
    %35 = vector.load %arg10[%c0_25, %c0_26] : memref<1x4xf32, #tpu.memory_space<vmem>>, vector<1x4xf32>
    %36 = vector.broadcast %35 : vector<1x4xf32> to vector<8x4xf32>
    %37 = arith.addf %34, %36 : vector<8x4xf32>
    %c0_27 = arith.constant 0 : index
    %c0_28 = arith.constant 0 : index
    %38 = vector.load %arg11[%c0_27, %c0_28] : memref<8x4xf32, #tpu.memory_space<vmem>>, vector<8x4xf32>
    tpu.vector_store %arg11[%c0_27, %c0_28], %37 {strides = array<i32>} : memref<8x4xf32, #tpu.memory_space<vmem>>, vector<8x4xf32>,
    return
  }
  func.func @transform_0(%arg0: i32) -> (i32, i32) {
    %c0_i32 = arith.constant 0 : i32
    %c0_i32_0 = arith.constant 0 : i32
    return %arg0, %c0_i32 : i32, i32
  }
  func.func @transform_1(%arg0: i32) -> (i32, i32) {
    %c0_i32 = arith.constant 0 : i32
    %c0_i32_0 = arith.constant 0 : i32
    %c0_i32_1 = arith.constant 0 : i32
    return %c0_i32, %c0_i32_0 : i32, i32
  }
  func.func @transform_2(%arg0: i32) -> (i32, i32) {
    %c0_i32 = arith.constant 0 : i32
    %c0_i32_0 = arith.constant 0 : i32
    %c0_i32_1 = arith.constant 0 : i32
    return %c0_i32, %c0_i32_0 : i32, i32
  }
  func.func @transform_3(%arg0: i32) -> (i32, i32) {
    %c0_i32 = arith.constant 0 : i32
    %c0_i32_0 = arith.constant 0 : i32
    %c0_i32_1 = arith.constant 0 : i32
    return %c0_i32, %c0_i32_0 : i32, i32
  }
  func.func @transform_4(%arg0: i32) -> (i32, i32) {
    %c0_i32 = arith.constant 0 : i32
    %c0_i32_0 = arith.constant 0 : i32
    %c0_i32_1 = arith.constant 0 : i32
    return %c0_i32, %c0_i32_0 : i32, i32
  }
  func.func @transform_5(%arg0: i32) -> (i32, i32) {
    %c0_i32 = arith.constant 0 : i32
    %c0_i32_0 = arith.constant 0 : i32
    %c0_i32_1 = arith.constant 0 : i32
    return %c0_i32, %c0_i32_0 : i32, i32
  }
  func.func @transform_6(%arg0: i32) -> (i32, i32) {
    %c0_i32 = arith.constant 0 : i32
    %c0_i32_0 = arith.constant 0 : i32
    %c0_i32_1 = arith.constant 0 : i32
    return %c0_i32, %c0_i32_0 : i32, i32
  }
  func.func @transform_7(%arg0: i32) -> (i32, i32) {
    %c0_i32 = arith.constant 0 : i32
    %c0_i32_0 = arith.constant 0 : i32
    %c0_i32_1 = arith.constant 0 : i32
    return %c0_i32, %c0_i32_0 : i32, i32
  }
  func.func @transform_8(%arg0: i32) -> (i32, i32) {
    %c0_i32 = arith.constant 0 : i32
    %c0_i32_0 = arith.constant 0 : i32
    %c0_i32_1 = arith.constant 0 : i32
    return %c0_i32, %c0_i32_0 : i32, i32
  }
  func.func @transform_9(%arg0: i32) -> (i32, i32) {
    %c0_i32 = arith.constant 0 : i32
    %c0_i32_0 = arith.constant 0 : i32
    %c0_i32_1 = arith.constant 0 : i32
    return %c0_i32, %c0_i32_0 : i32, i32
  }
  func.func @transform_10(%arg0: i32) -> (i32, i32) {
    %c0_i32 = arith.constant 0 : i32
    %c0_i32_0 = arith.constant 0 : i32
    return %arg0, %c0_i32 : i32, i32
  }
}

</mosaic_0001>

<llo_original>
// kernel: tpu_custom_call.1
$region0: #{tpu_custom_call.1}
  #allocation0 [shape = 'u32[]', space=smem, size = 0x4, offset = 0x4, fixed_abs, tag = 'smem constant byte address 0x4 - core index']
  #allocation1 [shape = 'u32[144,128]{1,0:T(1,128)}', space=vmem, size = 0x12000, scoped, tag = 'internal scratch']
  %s0 = inlined_call_operand.vmem [shape: f32[16,4], index: 0, kind: input, shape index: {}]
  %s1 = inlined_call_operand.vmem [shape: f32[4,2], index: 1, kind: input, shape index: {}]
  %s2 = inlined_call_operand.vmem [shape: f32[1,2], index: 2, kind: input, shape index: {}]
  %s3 = inlined_call_operand.vmem [shape: f32[4,2], index: 3, kind: input, shape index: {}]
  %s4 = inlined_call_operand.vmem [shape: f32[1,2], index: 4, kind: input, shape index: {}]
  %s5 = inlined_call_operand.vmem [shape: f32[4,64], index: 5, kind: input, shape index: {}]
  %s6 = inlined_call_operand.vmem [shape: f32[1,64], index: 6, kind: input, shape index: {}]
  %s7 = inlined_call_operand.vmem [shape: f32[1,64], index: 7, kind: input, shape index: {}]
  %s8 = inlined_call_operand.vmem [shape: f32[64,4], index: 8, kind: input, shape index: {}]
  %s9 = inlined_call_operand.vmem [shape: f32[1,4], index: 9, kind: input, shape index: {}]
  %s10 = inlined_call_operand.vmem [shape: f32[16,4], index: 10, kind: output, shape index: {}]
  %s11 = sld [smem:[#allocation0]]
  $region73: #{tpu_custom_call.1} parent=0
    _
  %s13 = ssub.s32 1, %s11
  %s14 = scalar_select 0, %s13, %s11
  loop: start=0, step=1, limit=4
  $region2: #{tpu_custom_call.1} parent=0 // loop_pre_header
    _
  $region3: #{tpu_custom_call.1} parent=0 // loop_header
    %s16 = sphi 0, %s20
    %p17 = scmp.ge.s32.totalorder %s16, 4
    %s26 = sphi 0, %s28
    %s29 = sphi 0, %s26
    %s30 = sphi 0, %s29
    %s46 = sphi 0, %s30
    %s50 = sphi 0, %s50
    %s52 = sphi 0, %s50
    %s53 = sphi 0, %s52
    %s67 = sphi 0, %s53
    %s71 = sphi 0, %s71
    %s73 = sphi 0, %s71
    %s74 = sphi 0, %s73
    %s88 = sphi 0, %s74
    %s92 = sphi 0, %s92
    %s94 = sphi 0, %s92
    %s95 = sphi 0, %s94
    %s109 = sphi 0, %s95
    %s113 = sphi 0, %s113
    %s115 = sphi 0, %s113
    %s116 = sphi 0, %s115
    %s130 = sphi 0, %s116
    %s134 = sphi 0, %s134
    %s136 = sphi 0, %s134
    %s137 = sphi 0, %s136
    %s151 = sphi 0, %s137
    %s155 = sphi 0, %s155
    %s157 = sphi 0, %s155
    %s158 = sphi 0, %s157
    %s172 = sphi 0, %s158
    %s176 = sphi 0, %s176
    %s178 = sphi 0, %s176
    %s179 = sphi 0, %s178
    %s193 = sphi 0, %s179
    %s197 = sphi 0, %s197
    %s199 = sphi 0, %s197
    %s200 = sphi 0, %s199
    %s214 = sphi 0, %s200
    %s218 = sphi 0, %s218
    %s220 = sphi 0, %s218
    %s221 = sphi 0, %s220
    %s235 = sphi 0, %s221
    %s241 = sphi 0, %s243
    %s244 = sphi 0, %s241
    %s245 = sphi 0, %s244
    %s261 = sphi 0, %s245
  $region4: #{tpu_custom_call.1} parent=0 // loop_header_branch
    %19 = sbr.rel (%p17) target = $region8
  $region5: #{tpu_custom_call.1} parent=0 // loop_body
    %s21 = ssub.s32 %s16, 1
    %s22 = ssub.s32 %s16, 2
    %s23 = sadd.s32 %s16, 1
    %s24 = ssub.s32 %s16, %s23
    %p25 = scmp.eq.s32.totalorder %s24, 0
    %s27 = sadd.s32 %s26, 1
    %s28 = scalar_select %p25, %s26, %s27
    %p31 = pneg %p25
    %p32 = scmp.eq.s32.totalorder %s16, 1
    %p33 = por %p31, %p32
    %p34 = scmp.ne.s32.totalorder %s26, %s29
    %p35 = scmp.eq.s32.totalorder %s16, 0
    %p36 = por %p34, %p35
    %p37 = scmp.ne.s32.totalorder %s26, %s29
    %p38 = scmp.eq.s32.totalorder %s21, 1
    %p39 = por %p37, %p38
    %p40 = scmp.ne.s32.totalorder %s29, %s30
    %p41 = scmp.eq.s32.totalorder %s21, 0
    %p42 = por %p40, %p41
    %p43 = scmp.ne.s32.totalorder %s29, %s30
    %p44 = scmp.eq.s32.totalorder %s22, 1
    %p45 = por %p43, %p44
    %p47 = scmp.ne.s32.totalorder %s30, %s46
    %p48 = scmp.eq.s32.totalorder %s22, 0
    %p49 = por %p47, %p48
    %s51 = sadd.s32 %s50, 1
    %p54 = scmp.eq.s32.totalorder %s16, 1
    %p55 = scmp.ne.s32.totalorder %s50, %s52
    %p56 = scmp.eq.s32.totalorder %s16, 0
    %p57 = por %p55, %p56
    %p58 = scmp.ne.s32.totalorder %s50, %s52
    %p59 = scmp.eq.s32.totalorder %s21, 1
    %p60 = por %p58, %p59
    %p61 = scmp.ne.s32.totalorder %s52, %s53
    %p62 = scmp.eq.s32.totalorder %s21, 0
    %p63 = por %p61, %p62
    %p64 = scmp.ne.s32.totalorder %s52, %s53
    %p65 = scmp.eq.s32.totalorder %s22, 1
    %p66 = por %p64, %p65
    %p68 = scmp.ne.s32.totalorder %s53, %s67
    %p69 = scmp.eq.s32.totalorder %s22, 0
    %p70 = por %p68, %p69
    %s72 = sadd.s32 %s71, 1
    %p75 = scmp.eq.s32.totalorder %s16, 1
    %p76 = scmp.ne.s32.totalorder %s71, %s73
    %p77 = scmp.eq.s32.totalorder %s16, 0
    %p78 = por %p76, %p77
    %p79 = scmp.ne.s32.totalorder %s71, %s73
    %p80 = scmp.eq.s32.totalorder %s21, 1
    %p81 = por %p79, %p80
    %p82 = scmp.ne.s32.totalorder %s73, %s74
    %p83 = scmp.eq.s32.totalorder %s21, 0
    %p84 = por %p82, %p83
    %p85 = scmp.ne.s32.totalorder %s73, %s74
    %p86 = scmp.eq.s32.totalorder %s22, 1
    %p87 = por %p85, %p86
    %p89 = scmp.ne.s32.totalorder %s74, %s88
    %p90 = scmp.eq.s32.totalorder %s22, 0
    %p91 = por %p89, %p90
    %s93 = sadd.s32 %s92, 1
    %p96 = scmp.eq.s32.totalorder %s16, 1
    %p97 = scmp.ne.s32.totalorder %s92, %s94
    %p98 = scmp.eq.s32.totalorder %s16, 0
    %p99 = por %p97, %p98
    %p100 = scmp.ne.s32.totalorder %s92, %s94
    %p101 = scmp.eq.s32.totalorder %s21, 1
    %p102 = por %p100, %p101
    %p103 = scmp.ne.s32.totalorder %s94, %s95
    %p104 = scmp.eq.s32.totalorder %s21, 0
    %p105 = por %p103, %p104
    %p106 = scmp.ne.s32.totalorder %s94, %s95
    %p107 = scmp.eq.s32.totalorder %s22, 1
    %p108 = por %p106, %p107
    %p110 = scmp.ne.s32.totalorder %s95, %s109
    %p111 = scmp.eq.s32.totalorder %s22, 0
    %p112 = por %p110, %p111
    %s114 = sadd.s32 %s113, 1
    %p117 = scmp.eq.s32.totalorder %s16, 1
    %p118 = scmp.ne.s32.totalorder %s113, %s115
    %p119 = scmp.eq.s32.totalorder %s16, 0
    %p120 = por %p118, %p119
    %p121 = scmp.ne.s32.totalorder %s113, %s115
    %p122 = scmp.eq.s32.totalorder %s21, 1
    %p123 = por %p121, %p122
    %p124 = scmp.ne.s32.totalorder %s115, %s116
    %p125 = scmp.eq.s32.totalorder %s21, 0
    %p126 = por %p124, %p125
    %p127 = scmp.ne.s32.totalorder %s115, %s116
    %p128 = scmp.eq.s32.totalorder %s22, 1
    %p129 = por %p127, %p128
    %p131 = scmp.ne.s32.totalorder %s116, %s130
    %p132 = scmp.eq.s32.totalorder %s22, 0
    %p133 = por %p131, %p132
    %s135 = sadd.s32 %s134, 1
    %p138 = scmp.eq.s32.totalorder %s16, 1
    %p139 = scmp.ne.s32.totalorder %s134, %s136
    %p140 = scmp.eq.s32.totalorder %s16, 0
    %p141 = por %p139, %p140
    %p142 = scmp.ne.s32.totalorder %s134, %s136
    %p143 = scmp.eq.s32.totalorder %s21, 1
    %p144 = por %p142, %p143
    %p145 = scmp.ne.s32.totalorder %s136, %s137
    %p146 = scmp.eq.s32.totalorder %s21, 0
    %p147 = por %p145, %p146
    %p148 = scmp.ne.s32.totalorder %s136, %s137
    %p149 = scmp.eq.s32.totalorder %s22, 1
    %p150 = por %p148, %p149
    %p152 = scmp.ne.s32.totalorder %s137, %s151
    %p153 = scmp.eq.s32.totalorder %s22, 0
    %p154 = por %p152, %p153
    %s156 = sadd.s32 %s155, 1
    %p159 = scmp.eq.s32.totalorder %s16, 1
    %p160 = scmp.ne.s32.totalorder %s155, %s157
    %p161 = scmp.eq.s32.totalorder %s16, 0
    %p162 = por %p160, %p161
    %p163 = scmp.ne.s32.totalorder %s155, %s157
    %p164 = scmp.eq.s32.totalorder %s21, 1
    %p165 = por %p163, %p164
    %p166 = scmp.ne.s32.totalorder %s157, %s158
    %p167 = scmp.eq.s32.totalorder %s21, 0
    %p168 = por %p166, %p167
    %p169 = scmp.ne.s32.totalorder %s157, %s158
    %p170 = scmp.eq.s32.totalorder %s22, 1
    %p171 = por %p169, %p170
    %p173 = scmp.ne.s32.totalorder %s158, %s172
    %p174 = scmp.eq.s32.totalorder %s22, 0
    %p175 = por %p173, %p174
    %s177 = sadd.s32 %s176, 1
    %p180 = scmp.eq.s32.totalorder %s16, 1
    %p181 = scmp.ne.s32.totalorder %s176, %s178
    %p182 = scmp.eq.s32.totalorder %s16, 0
    %p183 = por %p181, %p182
    %p184 = scmp.ne.s32.totalorder %s176, %s178
    %p185 = scmp.eq.s32.totalorder %s21, 1
    %p186 = por %p184, %p185
    %p187 = scmp.ne.s32.totalorder %s178, %s179
    %p188 = scmp.eq.s32.totalorder %s21, 0
    %p189 = por %p187, %p188
    %p190 = scmp.ne.s32.totalorder %s178, %s179
    %p191 = scmp.eq.s32.totalorder %s22, 1
    %p192 = por %p190, %p191
    %p194 = scmp.ne.s32.totalorder %s179, %s193
    %p195 = scmp.eq.s32.totalorder %s22, 0
    %p196 = por %p194, %p195
    %s198 = sadd.s32 %s197, 1
    %p201 = scmp.eq.s32.totalorder %s16, 1
    %p202 = scmp.ne.s32.totalorder %s197, %s199
    %p203 = scmp.eq.s32.totalorder %s16, 0
    %p204 = por %p202, %p203
    %p205 = scmp.ne.s32.totalorder %s197, %s199
    %p206 = scmp.eq.s32.totalorder %s21, 1
    %p207 = por %p205, %p206
    %p208 = scmp.ne.s32.totalorder %s199, %s200
    %p209 = scmp.eq.s32.totalorder %s21, 0
    %p210 = por %p208, %p209
    %p211 = scmp.ne.s32.totalorder %s199, %s200
    %p212 = scmp.eq.s32.totalorder %s22, 1
    %p213 = por %p211, %p212
    %p215 = scmp.ne.s32.totalorder %s200, %s214
    %p216 = scmp.eq.s32.totalorder %s22, 0
    %p217 = por %p215, %p216
    %s219 = sadd.s32 %s218, 1
    %p222 = scmp.eq.s32.totalorder %s16, 1
    %p223 = scmp.ne.s32.totalorder %s218, %s220
    %p224 = scmp.eq.s32.totalorder %s16, 0
    %p225 = por %p223, %p224
    %p226 = scmp.ne.s32.totalorder %s218, %s220
    %p227 = scmp.eq.s32.totalorder %s21, 1
    %p228 = por %p226, %p227
    %p229 = scmp.ne.s32.totalorder %s220, %s221
    %p230 = scmp.eq.s32.totalorder %s21, 0
    %p231 = por %p229, %p230
    %p232 = scmp.ne.s32.totalorder %s220, %s221
    %p233 = scmp.eq.s32.totalorder %s22, 1
    %p234 = por %p232, %p233
    %p236 = scmp.ne.s32.totalorder %s221, %s235
    %p237 = scmp.eq.s32.totalorder %s22, 0
    %p238 = por %p236, %p237
    %s239 = ssub.s32 %s16, %s23
    %p240 = scmp.eq.s32.totalorder %s239, 0
    %s242 = sadd.s32 %s241, 1
    %s243 = scalar_select %p240, %s241, %s242
    %p246 = pneg %p240
    %p247 = scmp.eq.s32.totalorder %s16, 1
    %p248 = por %p246, %p247
    %p249 = scmp.ne.s32.totalorder %s241, %s244
    %p250 = scmp.eq.s32.totalorder %s16, 0
    %p251 = por %p249, %p250
    %p252 = scmp.ne.s32.totalorder %s241, %s244
    %p253 = scmp.eq.s32.totalorder %s21, 1
    %p254 = por %p252, %p253
    %p255 = scmp.ne.s32.totalorder %s244, %s245
    %p256 = scmp.eq.s32.totalorder %s21, 0
    %p257 = por %p255, %p256
    %p258 = scmp.ne.s32.totalorder %s244, %s245
    %p259 = scmp.eq.s32.totalorder %s22, 1
    %p260 = por %p258, %p259
    %p262 = scmp.ne.s32.totalorder %s245, %s261
    %p263 = scmp.eq.s32.totalorder %s22, 0
    %p264 = por %p262, %p263
    %p265 = scmp.le.s32.totalorder 1, %s16
    %p266 = scmp.lt.s32.totalorder %s16, 3
    %p267 = pnand %p265, %p266
    %p268 = pneg %p267
    // Predicated region
    $region9: #{tpu_custom_call.1} parent=5 // pred_check
      _
    $region10: #{tpu_custom_call.1} parent=5 // pred_check_branch
      %270 = sbr.rel (%p267) target = $region12
    $region11: #{tpu_custom_call.1} parent=5 // pred_region
      %s271 = ssub.s32 %s16, 1
      // Predicated region
      $region13: #{tpu_custom_call.1} parent=11 // pred_check
        %p272 = pneg %p63
      $region14: #{tpu_custom_call.1} parent=11 // pred_check_branch
        %274 = sbr.rel (%p272) target = $region16
      $region15: #{tpu_custom_call.1} parent=11 // pred_region
        _
      $region16: #{tpu_custom_call.1} parent=11 // pred_fallthru
        _
      // Predicated region
      $region17: #{tpu_custom_call.1} parent=11 // pred_check
        %p275 = pneg %p84
      $region18: #{tpu_custom_call.1} parent=11 // pred_check_branch
        %277 = sbr.rel (%p275) target = $region20
      $region19: #{tpu_custom_call.1} parent=11 // pred_region
        _
      $region20: #{tpu_custom_call.1} parent=11 // pred_fallthru
        _
      // Predicated region
      $region21: #{tpu_custom_call.1} parent=11 // pred_check
        %p278 = pneg %p105
      $region22: #{tpu_custom_call.1} parent=11 // pred_check_branch
        %280 = sbr.rel (%p278) target = $region24
      $region23: #{tpu_custom_call.1} parent=11 // pred_region
        _
      $region24: #{tpu_custom_call.1} parent=11 // pred_fallthru
        _
      // Predicated region
      $region25: #{tpu_custom_call.1} parent=11 // pred_check
        %p281 = pneg %p126
      $region26: #{tpu_custom_call.1} parent=11 // pred_check_branch
        %283 = sbr.rel (%p281) target = $region28
      $region27: #{tpu_custom_call.1} parent=11 // pred_region
        _
      $region28: #{tpu_custom_call.1} parent=11 // pred_fallthru
        _
      // Predicated region
      $region29: #{tpu_custom_call.1} parent=11 // pred_check
        %p284 = pneg %p147
      $region30: #{tpu_custom_call.1} parent=11 // pred_check_branch
        %286 = sbr.rel (%p284) target = $region32
      $region31: #{tpu_custom_call.1} parent=11 // pred_region
        _
      $region32: #{tpu_custom_call.1} parent=11 // pred_fallthru
        _
      // Predicated region
      $region33: #{tpu_custom_call.1} parent=11 // pred_check
        %p287 = pneg %p168
      $region34: #{tpu_custom_call.1} parent=11 // pred_check_branch
        %289 = sbr.rel (%p287) target = $region36
      $region35: #{tpu_custom_call.1} parent=11 // pred_region
        _
      $region36: #{tpu_custom_call.1} parent=11 // pred_fallthru
        _
      // Predicated region
      $region37: #{tpu_custom_call.1} parent=11 // pred_check
        %p290 = pneg %p189
      $region38: #{tpu_custom_call.1} parent=11 // pred_check_branch
        %292 = sbr.rel (%p290) target = $region40
      $region39: #{tpu_custom_call.1} parent=11 // pred_region
        _
      $region40: #{tpu_custom_call.1} parent=11 // pred_fallthru
        _
      // Predicated region
      $region41: #{tpu_custom_call.1} parent=11 // pred_check
        %p293 = pneg %p210
      $region42: #{tpu_custom_call.1} parent=11 // pred_check_branch
        %295 = sbr.rel (%p293) target = $region44
      $region43: #{tpu_custom_call.1} parent=11 // pred_region
        _
      $region44: #{tpu_custom_call.1} parent=11 // pred_fallthru
        _
      // Predicated region
      $region45: #{tpu_custom_call.1} parent=11 // pred_check
        %p296 = pneg %p231
      $region46: #{tpu_custom_call.1} parent=11 // pred_check_branch
        %298 = sbr.rel (%p296) target = $region48
      $region47: #{tpu_custom_call.1} parent=11 // pred_region
        _
      $region48: #{tpu_custom_call.1} parent=11 // pred_fallthru
        _
    $region12: #{tpu_custom_call.1} parent=5 // pred_fallthru
      _
    %p299 = scmp.lt.s32.totalorder %s16, 2
    // Predicated region
    $region49: #{tpu_custom_call.1} parent=5 // pred_check
      %p300 = pneg %p299
    $region50: #{tpu_custom_call.1} parent=5 // pred_check_branch
      %302 = sbr.rel (%p300) target = $region52
    $region51: #{tpu_custom_call.1} parent=5 // pred_region
      // Predicated region
      $region53: #{tpu_custom_call.1} parent=51 // pred_check
        %p303 = pneg %p36
      $region54: #{tpu_custom_call.1} parent=51 // pred_check_branch
        %305 = sbr.rel (%p303) target = $region56
      $region55: #{tpu_custom_call.1} parent=51 // pred_region
        %p306 = scmp.lt.s32.totalorder %s16, 1
        %s307 = scalar_select %p306, %s16, 1
        %s308 = smul.addr %s307, 8
        %s309 = scalar_lea.vmem %s0, %s308
      $region56: #{tpu_custom_call.1} parent=51 // pred_fallthru
        _
    $region52: #{tpu_custom_call.1} parent=5 // pred_fallthru
      _
    %p310 = scmp.le.s32.totalorder 1, %s16
    %p311 = scmp.lt.s32.totalorder %s16, 3
    %p312 = pnand %p310, %p311
    %p313 = pneg %p312
    // Predicated region
    $region57: #{tpu_custom_call.1} parent=5 // pred_check
      _
    $region58: #{tpu_custom_call.1} parent=5 // pred_check_branch
      %315 = sbr.rel (%p312) target = $region60
    $region59: #{tpu_custom_call.1} parent=5 // pred_region
      %s316 = ssub.s32 %s16, 1
      %p317 = scmp.lt.s32.totalorder %s21, 1
      %s318 = scalar_select %p317, %s21, 1
      %s319 = smul.addr %s318, 8
      %s320 = scalar_lea.vmem %s0, %s319
      %p321 = pneg %p42
      %p322 = pneg %p39
      %p323 = pneg %p63
      %p324 = pneg %p60
      %p325 = pneg %p84
      %p326 = pneg %p81
      %p327 = pneg %p105
      %p328 = pneg %p102
      %p329 = pneg %p126
      %p330 = pneg %p123
      %p331 = pneg %p147
      %p332 = pneg %p144
      %p333 = pneg %p168
      %p334 = pneg %p165
      %p335 = pneg %p189
      %p336 = pneg %p186
      %p337 = pneg %p210
      %p338 = pneg %p207
      %p339 = pneg %p231
      %p340 = pneg %p228
      %p341 = pneg %p257
      %p342 = pneg %p254
      %p343 = scmp.lt.s32.totalorder %s21, 1
      %s344 = scalar_select %p343, %s21, 1
      %s345 = smul.addr %s344, 8
      %s346 = scalar_lea.vmem %s10, %s345
      %p347 = scmp.lt.s32.totalorder %s21, 1
      %s348 = scalar_select %p347, %s21, 1
      %s349 = smul.addr %s348, 8
      %s350 = scalar_lea.vmem %s0, %s349
      %p351 = scmp.lt.s32.totalorder %s21, 1
      %s352 = scalar_select %p351, %s21, 1
      %s353 = smul.addr %s352, 8
      %s354 = scalar_lea.vmem %s10, %s353
      %v355 = vld [vmem:[%s350] sm:$0xff]
      %v356 = vld [vmem:[%s1] sm:$0xf]
      %v357 = vld [vmem:[%s2] sm:$0x1]
      %v359 = vlaneseq
      %v360 = vshrl.u32 %v359, 7
      %v361 = vsub.s32 0, %v360
      %v362 = vrot.slane %v357, %v361
      %vm364 = vcmask 31744
      %v366 = vsel %vm364, %v355, 0
      %vm368 = vcmask 1043456
      %v370 = vsel %vm368, %v356, 0
      %372 = vmatprep.subr.mxu0 0.0
      %373 = vmatpush1.msra.mxu0 %v370
      %374 = vmatprep.subr.mxu0 0.0
      %375 = vmatpush1.msra.mxu0 0.0
      %376 = vmatprep.subr.mxu0 0.0
      %377 = vmatpush1.msra.mxu0 0.0
      %378 = vmatprep.subr.mxu0 0.0
      %379 = vmatpush1.msra.mxu0 0.0
      %380 = vmatprep.subr.mxu0 0.0
      %381 = vmatpush1.msra.mxu0 0.0
      %382 = vmatprep.subr.mxu0 0.0
      %383 = vmatpush1.msra.mxu0 0.0
      %384 = vmatprep.subr.mxu0 0.0
      %385 = vmatpush1.msra.mxu0 0.0
      %386 = vmatprep.subr.mxu0 0.0
      %387 = vmatpush1.msra.mxu0 0.0
      %388 = vmatprep.subr.mxu0 0.0
      %389 = vmatpush1.msra.mxu0 0.0
      %390 = vmatprep.subr.mxu0 0.0
      %391 = vmatpush1.msra.mxu0 0.0
      %392 = vmatprep.subr.mxu0 0.0
      %393 = vmatpush1.msra.mxu0 0.0
      %394 = vmatprep.subr.mxu0 0.0
      %395 = vmatpush1.msra.mxu0 0.0
      %396 = vmatprep.subr.mxu0 0.0
      %397 = vmatpush1.msra.mxu0 0.0
      %398 = vmatprep.subr.mxu0 0.0
      %399 = vmatpush1.msra.mxu0 0.0
      %400 = vmatprep.subr.mxu0 0.0
      %401 = vmatpush1.msra.mxu0 0.0
      %402 = vmatprep.subr.mxu0 0.0
      %403 = vmatpush1.msra.mxu0 0.0
      %404 = vmatprep.subr.mxu0 0.0
      %405 = vmatpush1.msra.mxu0 0.0
      %406 = vmatprep.subr.mxu0 0.0
      %407 = vmatpush1.msra.mxu0 0.0
      %408 = vmatprep.subr.mxu0 0.0
      %409 = vmatpush1.msra.mxu0 0.0
      %410 = vmatprep.subr.mxu0 0.0
      %411 = vmatpush1.msra.mxu0 0.0
      %412 = vmatprep.subr.mxu0 0.0
      %413 = vmatpush1.msra.mxu0 0.0
      %414 = vmatprep.subr.mxu0 0.0
      %415 = vmatpush1.msra.mxu0 0.0
      %416 = vmatprep.subr.mxu0 0.0
      %417 = vmatpush1.msra.mxu0 0.0
      %418 = vmatprep.subr.mxu0 0.0
      %419 = vmatpush1.msra.mxu0 0.0
      %420 = vmatprep.subr.mxu0 0.0
      %421 = vmatpush1.msra.mxu0 0.0
      %422 = vmatprep.subr.mxu0 0.0
      %423 = vmatpush1.msra.mxu0 0.0
      %424 = vmatprep.subr.mxu0 0.0
      %425 = vmatpush1.msra.mxu0 0.0
      %426 = vmatprep.subr.mxu0 0.0
      %427 = vmatpush1.msra.mxu0 0.0
      %428 = vmatprep.subr.mxu0 0.0
      %429 = vmatpush1.msra.mxu0 0.0
      %430 = vmatprep.subr.mxu0 0.0
      %431 = vmatpush1.msra.mxu0 0.0
      %432 = vmatprep.subr.mxu0 0.0
      %433 = vmatpush1.msra.mxu0 0.0
      %434 = vmatprep.subr.mxu0 0.0
      %435 = vmatpush1.msra.mxu0 0.0
      %436 = vmatprep.mubr.f32.mxu0 0.0
      %437 = vmatmul.mubr.f32.gmra.mrb[0].mxu0 %v366
      %v438 = vpop.f32.mrb[0].mxu0
      %v439 = vadd.f32 %v362, %v438
      %v440 = vpop.f32.mrb[0].mxu0
      %441 = vdwg.mxu0
      %v442 = vld [vmem:[%s3] sm:$0xf]
      %v443 = vld [vmem:[%s4] sm:$0x1]
      %v445 = vlaneseq
      %v446 = vshrl.u32 %v445, 7
      %v447 = vsub.s32 0, %v446
      %v448 = vrot.slane %v443, %v447
      %v451 = vsel %vm368, %v442, 0
      %453 = vmatprep.subr.mxu0 0.0
      %454 = vmatpush1.msra.mxu0 %v451
      %455 = vmatprep.subr.mxu0 0.0
      %456 = vmatpush1.msra.mxu0 0.0
      %457 = vmatprep.subr.mxu0 0.0
      %458 = vmatpush1.msra.mxu0 0.0
      %459 = vmatprep.subr.mxu0 0.0
      %460 = vmatpush1.msra.mxu0 0.0
      %461 = vmatprep.subr.mxu0 0.0
      %462 = vmatpush1.msra.mxu0 0.0
      %463 = vmatprep.subr.mxu0 0.0
      %464 = vmatpush1.msra.mxu0 0.0
      %465 = vmatprep.subr.mxu0 0.0
      %466 = vmatpush1.msra.mxu0 0.0
      %467 = vmatprep.subr.mxu0 0.0
      %468 = vmatpush1.msra.mxu0 0.0
      %469 = vmatprep.subr.mxu0 0.0
      %470 = vmatpush1.msra.mxu0 0.0
      %471 = vmatprep.subr.mxu0 0.0
      %472 = vmatpush1.msra.mxu0 0.0
      %473 = vmatprep.subr.mxu0 0.0
      %474 = vmatpush1.msra.mxu0 0.0
      %475 = vmatprep.subr.mxu0 0.0
      %476 = vmatpush1.msra.mxu0 0.0
      %477 = vmatprep.subr.mxu0 0.0
      %478 = vmatpush1.msra.mxu0 0.0
      %479 = vmatprep.subr.mxu0 0.0
      %480 = vmatpush1.msra.mxu0 0.0
      %481 = vmatprep.subr.mxu0 0.0
      %482 = vmatpush1.msra.mxu0 0.0
      %483 = vmatprep.subr.mxu0 0.0
      %484 = vmatpush1.msra.mxu0 0.0
      %485 = vmatprep.subr.mxu0 0.0
      %486 = vmatpush1.msra.mxu0 0.0
      %487 = vmatprep.subr.mxu0 0.0
      %488 = vmatpush1.msra.mxu0 0.0
      %489 = vmatprep.subr.mxu0 0.0
      %490 = vmatpush1.msra.mxu0 0.0
      %491 = vmatprep.subr.mxu0 0.0
      %492 = vmatpush1.msra.mxu0 0.0
      %493 = vmatprep.subr.mxu0 0.0
      %494 = vmatpush1.msra.mxu0 0.0
      %495 = vmatprep.subr.mxu0 0.0
      %496 = vmatpush1.msra.mxu0 0.0
      %497 = vmatprep.subr.mxu0 0.0
      %498 = vmatpush1.msra.mxu0 0.0
      %499 = vmatprep.subr.mxu0 0.0
      %500 = vmatpush1.msra.mxu0 0.0
      %501 = vmatprep.subr.mxu0 0.0
      %502 = vmatpush1.msra.mxu0 0.0
      %503 = vmatprep.subr.mxu0 0.0
      %504 = vmatpush1.msra.mxu0 0.0
      %505 = vmatprep.subr.mxu0 0.0
      %506 = vmatpush1.msra.mxu0 0.0
      %507 = vmatprep.subr.mxu0 0.0
      %508 = vmatpush1.msra.mxu0 0.0
      %509 = vmatprep.subr.mxu0 0.0
      %510 = vmatpush1.msra.mxu0 0.0
      %511 = vmatprep.subr.mxu0 0.0
      %512 = vmatpush1.msra.mxu0 0.0
      %513 = vmatprep.subr.mxu0 0.0
      %514 = vmatpush1.msra.mxu0 0.0
      %515 = vmatprep.subr.mxu0 0.0
      %516 = vmatpush1.msra.mxu0 0.0
      %517 = vmatprep.mubr.f32.mxu0 0.0
      %518 = vmatmul.mubr.f32.gmra.mrb[0].mxu0 %v366
      %v519 = vpop.f32.mrb[0].mxu0
      %v520 = vadd.f32 %v448, %v519
      %v521 = vpop.f32.mrb[0].mxu0
      %522 = vdwg.mxu0
      %v523 = vld [vmem:[%s5] sm:$0xf]
      %v524 = vld [vmem:[%s6] sm:$0x1]
      %v526 = vlaneseq
      %v527 = vshrl.u32 %v526, 7
      %v528 = vsub.s32 0, %v527
      %v529 = vrot.slane %v524, %v528
      %v532 = vsel %vm368, %v523, 0
      %534 = vmatprep.subr.mxu0 0.0
      %535 = vmatpush1.msra.mxu0 %v532
      %536 = vmatprep.subr.mxu0 0.0
      %537 = vmatpush1.msra.mxu0 0.0
      %538 = vmatprep.subr.mxu0 0.0
      %539 = vmatpush1.msra.mxu0 0.0
      %540 = vmatprep.subr.mxu0 0.0
      %541 = vmatpush1.msra.mxu0 0.0
      %542 = vmatprep.subr.mxu0 0.0
      %543 = vmatpush1.msra.mxu0 0.0
      %544 = vmatprep.subr.mxu0 0.0
      %545 = vmatpush1.msra.mxu0 0.0
      %546 = vmatprep.subr.mxu0 0.0
      %547 = vmatpush1.msra.mxu0 0.0
      %548 = vmatprep.subr.mxu0 0.0
      %549 = vmatpush1.msra.mxu0 0.0
      %550 = vmatprep.subr.mxu0 0.0
      %551 = vmatpush1.msra.mxu0 0.0
      %552 = vmatprep.subr.mxu0 0.0
      %553 = vmatpush1.msra.mxu0 0.0
      %554 = vmatprep.subr.mxu0 0.0
      %555 = vmatpush1.msra.mxu0 0.0
      %556 = vmatprep.subr.mxu0 0.0
      %557 = vmatpush1.msra.mxu0 0.0
      %558 = vmatprep.subr.mxu0 0.0
      %559 = vmatpush1.msra.mxu0 0.0
      %560 = vmatprep.subr.mxu0 0.0
      %561 = vmatpush1.msra.mxu0 0.0
      %562 = vmatprep.subr.mxu0 0.0
      %563 = vmatpush1.msra.mxu0 0.0
      %564 = vmatprep.subr.mxu0 0.0
      %565 = vmatpush1.msra.mxu0 0.0
      %566 = vmatprep.subr.mxu0 0.0
      %567 = vmatpush1.msra.mxu0 0.0
      %568 = vmatprep.subr.mxu0 0.0
      %569 = vmatpush1.msra.mxu0 0.0
      %570 = vmatprep.subr.mxu0 0.0
      %571 = vmatpush1.msra.mxu0 0.0
      %572 = vmatprep.subr.mxu0 0.0
      %573 = vmatpush1.msra.mxu0 0.0
      %574 = vmatprep.subr.mxu0 0.0
      %575 = vmatpush1.msra.mxu0 0.0
      %576 = vmatprep.subr.mxu0 0.0
      %577 = vmatpush1.msra.mxu0 0.0
      %578 = vmatprep.subr.mxu0 0.0
      %579 = vmatpush1.msra.mxu0 0.0
      %580 = vmatprep.subr.mxu0 0.0
      %581 = vmatpush1.msra.mxu0 0.0
      %582 = vmatprep.subr.mxu0 0.0
      %583 = vmatpush1.msra.mxu0 0.0
      %584 = vmatprep.subr.mxu0 0.0
      %585 = vmatpush1.msra.mxu0 0.0
      %586 = vmatprep.subr.mxu0 0.0
      %587 = vmatpush1.msra.mxu0 0.0
      %588 = vmatprep.subr.mxu0 0.0
      %589 = vmatpush1.msra.mxu0 0.0
      %590 = vmatprep.subr.mxu0 0.0
      %591 = vmatpush1.msra.mxu0 0.0
      %592 = vmatprep.subr.mxu0 0.0
      %593 = vmatpush1.msra.mxu0 0.0
      %594 = vmatprep.subr.mxu0 0.0
      %595 = vmatpush1.msra.mxu0 0.0
      %596 = vmatprep.subr.mxu0 0.0
      %597 = vmatpush1.msra.mxu0 0.0
      %598 = vmatprep.mubr.f32.mxu0 0.0
      %599 = vmatmul.mubr.f32.gmra.mrb[0].mxu0 %v366
      %v600 = vpop.f32.mrb[0].mxu0
      %v601 = vadd.f32 %v529, %v600
      %v602 = vpop.f32.mrb[0].mxu0
      %603 = vdwg.mxu0
      %vm604 = vcmask 15360
      %v606 = vsel %vm604, %v520, 0
      %v609 = vsel %vm604, %v439, 0
      %611 = vmatprep.subr.mxu0 0.0
      %612 = vmatpush1.xpose.msra.mxu0 %v609
      %613 = vmatprep.subr.mxu0 0.0
      %614 = vmatpush1.xpose.msra.mxu0 0.0
      %615 = vmatprep.subr.mxu0 0.0
      %616 = vmatpush1.xpose.msra.mxu0 0.0
      %617 = vmatprep.subr.mxu0 0.0
      %618 = vmatpush1.xpose.msra.mxu0 0.0
      %619 = vmatprep.subr.mxu0 0.0
      %620 = vmatpush1.xpose.msra.mxu0 0.0
      %621 = vmatprep.subr.mxu0 0.0
      %622 = vmatpush1.xpose.msra.mxu0 0.0
      %623 = vmatprep.subr.mxu0 0.0
      %624 = vmatpush1.xpose.msra.mxu0 0.0
      %625 = vmatprep.subr.mxu0 0.0
      %626 = vmatpush1.xpose.msra.mxu0 0.0
      %627 = vmatprep.subr.mxu0 0.0
      %628 = vmatpush1.xpose.msra.mxu0 0.0
      %629 = vmatprep.subr.mxu0 0.0
      %630 = vmatpush1.xpose.msra.mxu0 0.0
      %631 = vmatprep.subr.mxu0 0.0
      %632 = vmatpush1.xpose.msra.mxu0 0.0
      %633 = vmatprep.subr.mxu0 0.0
      %634 = vmatpush1.xpose.msra.mxu0 0.0
      %635 = vmatprep.subr.mxu0 0.0
      %636 = vmatpush1.xpose.msra.mxu0 0.0
      %637 = vmatprep.subr.mxu0 0.0
      %638 = vmatpush1.xpose.msra.mxu0 0.0
      %639 = vmatprep.subr.mxu0 0.0
      %640 = vmatpush1.xpose.msra.mxu0 0.0
      %641 = vmatprep.subr.mxu0 0.0
      %642 = vmatpush1.xpose.msra.mxu0 0.0
      %643 = vmatprep.subr.mxu0 0.0
      %644 = vmatpush1.xpose.msra.mxu0 0.0
      %645 = vmatprep.subr.mxu0 0.0
      %646 = vmatpush1.xpose.msra.mxu0 0.0
      %647 = vmatprep.subr.mxu0 0.0
      %648 = vmatpush1.xpose.msra.mxu0 0.0
      %649 = vmatprep.subr.mxu0 0.0
      %650 = vmatpush1.xpose.msra.mxu0 0.0
      %651 = vmatprep.subr.mxu0 0.0
      %652 = vmatpush1.xpose.msra.mxu0 0.0
      %653 = vmatprep.subr.mxu0 0.0
      %654 = vmatpush1.xpose.msra.mxu0 0.0
      %655 = vmatprep.subr.mxu0 0.0
      %656 = vmatpush1.xpose.msra.mxu0 0.0
      %657 = vmatprep.subr.mxu0 0.0
      %658 = vmatpush1.xpose.msra.mxu0 0.0
      %659 = vmatprep.subr.mxu0 0.0
      %660 = vmatpush1.xpose.msra.mxu0 0.0
      %661 = vmatprep.subr.mxu0 0.0
      %662 = vmatpush1.xpose.msra.mxu0 0.0
      %663 = vmatprep.subr.mxu0 0.0
      %664 = vmatpush1.xpose.msra.mxu0 0.0
      %665 = vmatprep.subr.mxu0 0.0
      %666 = vmatpush1.xpose.msra.mxu0 0.0
      %667 = vmatprep.subr.mxu0 0.0
      %668 = vmatpush1.xpose.msra.mxu0 0.0
      %669 = vmatprep.subr.mxu0 0.0
      %670 = vmatpush1.xpose.msra.mxu0 0.0
      %671 = vmatprep.subr.mxu0 0.0
      %672 = vmatpush1.xpose.msra.mxu0 0.0
      %673 = vmatprep.subr.mxu0 0.0
      %674 = vmatpush1.xpose.msra.mxu0 0.0
      %675 = vmatprep.mubr.f32.mxu0 0.0
      %676 = vmatmul.mubr.f32.gmra.mrb[0].mxu0 %v606
      %v677 = vpop.f32.mrb[0].mxu0
      %v678 = vadd.f32 0.0, %v677
      %v679 = vpop.f32.mrb[0].mxu0
      %680 = vdwg.mxu0
      %vm681 = vcmask 64512
      %v682 = vsel %vm681, %v678, -inf
      %683 = vmax.xlane.f32.xlu0 %v682
      %v684 = vpop.xlane.xlu0 %683
      %v685 = vsub.f32 %v678, %v684
      %v686 = vmul.f32 %v685, 1.442695
      %v687 = vpow.pop %v686
      %v688 = vsel %vm681, %v687, 0.0
      %689 = vadd.xlane.f32.xlu0 %v688
      %v690 = vpop.xlane.xlu0 %689
      %v691 = vrcp.pop %v690
      %v692 = vmul.f32 %v687, %v691
      %v693 = vld [vmem:[%s7] sm:$0x1]
      %v695 = vlaneseq
      %v696 = vshrl.u32 %v695, 7
      %v697 = vsub.s32 0, %v696
      %v698 = vrot.slane %v693, %v697
      %v701 = vsel %vm681, %v692, 0
      %703 = vmatprep.subr.mxu0 0.0
      %704 = vmatpush1.msra.mxu0 %v601
      %705 = vmatprep.subr.mxu0 0.0
      %706 = vmatpush1.msra.mxu0 0.0
      %707 = vmatprep.subr.mxu0 0.0
      %708 = vmatpush1.msra.mxu0 0.0
      %709 = vmatprep.subr.mxu0 0.0
      %710 = vmatpush1.msra.mxu0 0.0
      %711 = vmatprep.subr.mxu0 0.0
      %712 = vmatpush1.msra.mxu0 0.0
      %713 = vmatprep.subr.mxu0 0.0
      %714 = vmatpush1.msra.mxu0 0.0
      %715 = vmatprep.subr.mxu0 0.0
      %716 = vmatpush1.msra.mxu0 0.0
      %717 = vmatprep.subr.mxu0 0.0
      %718 = vmatpush1.msra.mxu0 0.0
      %719 = vmatprep.subr.mxu0 0.0
      %720 = vmatpush1.msra.mxu0 0.0
      %721 = vmatprep.subr.mxu0 0.0
      %722 = vmatpush1.msra.mxu0 0.0
      %723 = vmatprep.subr.mxu0 0.0
      %724 = vmatpush1.msra.mxu0 0.0
      %725 = vmatprep.subr.mxu0 0.0
      %726 = vmatpush1.msra.mxu0 0.0
      %727 = vmatprep.subr.mxu0 0.0
      %728 = vmatpush1.msra.mxu0 0.0
      %729 = vmatprep.subr.mxu0 0.0
      %730 = vmatpush1.msra.mxu0 0.0
      %731 = vmatprep.subr.mxu0 0.0
      %732 = vmatpush1.msra.mxu0 0.0
      %733 = vmatprep.subr.mxu0 0.0
      %734 = vmatpush1.msra.mxu0 0.0
      %735 = vmatprep.subr.mxu0 0.0
      %736 = vmatpush1.msra.mxu0 0.0
      %737 = vmatprep.subr.mxu0 0.0
      %738 = vmatpush1.msra.mxu0 0.0
      %739 = vmatprep.subr.mxu0 0.0
      %740 = vmatpush1.msra.mxu0 0.0
      %741 = vmatprep.subr.mxu0 0.0
      %742 = vmatpush1.msra.mxu0 0.0
      %743 = vmatprep.subr.mxu0 0.0
      %744 = vmatpush1.msra.mxu0 0.0
      %745 = vmatprep.subr.mxu0 0.0
      %746 = vmatpush1.msra.mxu0 0.0
      %747 = vmatprep.subr.mxu0 0.0
      %748 = vmatpush1.msra.mxu0 0.0
      %749 = vmatprep.subr.mxu0 0.0
      %750 = vmatpush1.msra.mxu0 0.0
      %751 = vmatprep.subr.mxu0 0.0
      %752 = vmatpush1.msra.mxu0 0.0
      %753 = vmatprep.subr.mxu0 0.0
      %754 = vmatpush1.msra.mxu0 0.0
      %755 = vmatprep.subr.mxu0 0.0
      %756 = vmatpush1.msra.mxu0 0.0
      %757 = vmatprep.subr.mxu0 0.0
      %758 = vmatpush1.msra.mxu0 0.0
      %759 = vmatprep.subr.mxu0 0.0
      %760 = vmatpush1.msra.mxu0 0.0
      %761 = vmatprep.subr.mxu0 0.0
      %762 = vmatpush1.msra.mxu0 0.0
      %763 = vmatprep.subr.mxu0 0.0
      %764 = vmatpush1.msra.mxu0 0.0
      %765 = vmatprep.subr.mxu0 0.0
      %766 = vmatpush1.msra.mxu0 0.0
      %767 = vmatprep.mubr.f32.mxu0 0.0
      %768 = vmatmul.mubr.f32.gmra.mrb[0].mxu0 %v701
      %v769 = vpop.f32.mrb[0].mxu0
      %v770 = vadd.f32 %v698, %v769
      %v771 = vpop.f32.mrb[0].mxu0
      %772 = vdwg.mxu0
      %v773 = vmax.f32 %v770, 0.0
      %v774 = vld [vmem:[%s8] sm:$0xff]
      %v775 = vld [vmem:[%s8 + $0x8] sm:$0xff]
      %v776 = vld [vmem:[%s8 + $0x10] sm:$0xff]
      %v777 = vld [vmem:[%s8 + $0x18] sm:$0xff]
      %v778 = vld [vmem:[%s8 + $0x20] sm:$0xff]
      %v779 = vld [vmem:[%s8 + $0x28] sm:$0xff]
      %v780 = vld [vmem:[%s8 + $0x30] sm:$0xff]
      %v781 = vld [vmem:[%s8 + $0x38] sm:$0xff]
      %v782 = vld [vmem:[%s9] sm:$0x1]
      %v784 = vlaneseq
      %v785 = vshrl.u32 %v784, 7
      %v786 = vsub.s32 0, %v785
      %v787 = vrot.slane %v782, %v786
      %vm789 = vcmask 523264
      %v791 = vsel %vm789, %v773, 0
      %793 = vmatprep.subr.mxu0 0.0
      %794 = vmatpush1.msra.mxu0 %v774
      %795 = vmatprep.subr.mxu0 0.0
      %796 = vmatpush1.msra.mxu0 %v775
      %797 = vmatprep.subr.mxu0 0.0
      %798 = vmatpush1.msra.mxu0 %v776
      %799 = vmatprep.subr.mxu0 0.0
      %800 = vmatpush1.msra.mxu0 %v777
      %801 = vmatprep.subr.mxu0 0.0
      %802 = vmatpush1.msra.mxu0 %v778
      %803 = vmatprep.subr.mxu0 0.0
      %804 = vmatpush1.msra.mxu0 %v779
      %805 = vmatprep.subr.mxu0 0.0
      %806 = vmatpush1.msra.mxu0 %v780
      %807 = vmatprep.subr.mxu0 0.0
      %808 = vmatpush1.msra.mxu0 %v781
      %809 = vmatprep.subr.mxu0 0.0
      %810 = vmatpush1.msra.mxu0 0.0
      %811 = vmatprep.subr.mxu0 0.0
      %812 = vmatpush1.msra.mxu0 0.0
      %813 = vmatprep.subr.mxu0 0.0
      %814 = vmatpush1.msra.mxu0 0.0
      %815 = vmatprep.subr.mxu0 0.0
      %816 = vmatpush1.msra.mxu0 0.0
      %817 = vmatprep.subr.mxu0 0.0
      %818 = vmatpush1.msra.mxu0 0.0
      %819 = vmatprep.subr.mxu0 0.0
      %820 = vmatpush1.msra.mxu0 0.0
      %821 = vmatprep.subr.mxu0 0.0
      %822 = vmatpush1.msra.mxu0 0.0
      %823 = vmatprep.subr.mxu0 0.0
      %824 = vmatpush1.msra.mxu0 0.0
      %825 = vmatprep.subr.mxu0 0.0
      %826 = vmatpush1.msra.mxu0 0.0
      %827 = vmatprep.subr.mxu0 0.0
      %828 = vmatpush1.msra.mxu0 0.0
      %829 = vmatprep.subr.mxu0 0.0
      %830 = vmatpush1.msra.mxu0 0.0
      %831 = vmatprep.subr.mxu0 0.0
      %832 = vmatpush1.msra.mxu0 0.0
      %833 = vmatprep.subr.mxu0 0.0
      %834 = vmatpush1.msra.mxu0 0.0
      %835 = vmatprep.subr.mxu0 0.0
      %836 = vmatpush1.msra.mxu0 0.0
      %837 = vmatprep.subr.mxu0 0.0
      %838 = vmatpush1.msra.mxu0 0.0
      %839 = vmatprep.subr.mxu0 0.0
      %840 = vmatpush1.msra.mxu0 0.0
      %841 = vmatprep.subr.mxu0 0.0
      %842 = vmatpush1.msra.mxu0 0.0
      %843 = vmatprep.subr.mxu0 0.0
      %844 = vmatpush1.msra.mxu0 0.0
      %845 = vmatprep.subr.mxu0 0.0
      %846 = vmatpush1.msra.mxu0 0.0
      %847 = vmatprep.subr.mxu0 0.0
      %848 = vmatpush1.msra.mxu0 0.0
      %849 = vmatprep.subr.mxu0 0.0
      %850 = vmatpush1.msra.mxu0 0.0
      %851 = vmatprep.subr.mxu0 0.0
      %852 = vmatpush1.msra.mxu0 0.0
      %853 = vmatprep.subr.mxu0 0.0
      %854 = vmatpush1.msra.mxu0 0.0
      %855 = vmatprep.subr.mxu0 0.0
      %856 = vmatpush1.msra.mxu0 0.0
      %857 = vmatprep.mubr.f32.mxu0 0.0
      %858 = vmatmul.mubr.f32.gmra.mrb[0].mxu0 %v791
      %v859 = vpop.f32.mrb[0].mxu0
      %v860 = vadd.f32 %v787, %v859
      %v861 = vpop.f32.mrb[0].mxu0
      %862 = vdwg.mxu0
      %863 = vst.msk [vmem:[%s354] sm:$0xff] %vm364, %v860
      %p864 = scmp.lt.s32.totalorder %s21, 1
      %s865 = scalar_select %p864, %s21, 1
      %s866 = smul.addr %s865, 8
      %s867 = scalar_lea.vmem %s10, %s866
      // Predicated region
      $region61: #{tpu_custom_call.1} parent=59 // pred_check
        %p868 = pneg %p254
      $region62: #{tpu_custom_call.1} parent=59 // pred_check_branch
        %870 = sbr.rel (%p868) target = $region64
      $region63: #{tpu_custom_call.1} parent=59 // pred_region
        _
      $region64: #{tpu_custom_call.1} parent=59 // pred_fallthru
        _
    $region60: #{tpu_custom_call.1} parent=5 // pred_fallthru
      _
    %p871 = scmp.le.s32.totalorder 2, %s16
    // Predicated region
    $region65: #{tpu_custom_call.1} parent=5 // pred_check
      %p872 = pneg %p871
    $region66: #{tpu_custom_call.1} parent=5 // pred_check_branch
      %874 = sbr.rel (%p872) target = $region68
    $region67: #{tpu_custom_call.1} parent=5 // pred_region
      %s875 = ssub.s32 %s16, 2
      // Predicated region
      $region69: #{tpu_custom_call.1} parent=67 // pred_check
        %p876 = pneg %p260
      $region70: #{tpu_custom_call.1} parent=67 // pred_check_branch
        %878 = sbr.rel (%p876) target = $region72
      $region71: #{tpu_custom_call.1} parent=67 // pred_region
        %p879 = scmp.lt.s32.totalorder %s22, 1
        %s880 = scalar_select %p879, %s22, 1
        %s881 = smul.addr %s880, 8
        %s882 = scalar_lea.vmem %s10, %s881
      $region72: #{tpu_custom_call.1} parent=67 // pred_fallthru
        _
    $region68: #{tpu_custom_call.1} parent=5 // pred_fallthru
      _
  $region6: #{tpu_custom_call.1} parent=0 // loop_footer
    %s20 = sadd.s32 1, %s16
  $region7: #{tpu_custom_call.1} parent=0 // loop_footer_branch
    %15 = sbr.rel target = $region3
  $region8: #{tpu_custom_call.1} parent=0 // loop_exit
    _

</llo_original>
